<compile_context>
chip_gen: v6e
topology: v6e:2x2x1
jax: 0.10.0
libtpu: 0.0.40
codegen_flags: <defaults>
</compile_context>

<pallas_src>
import numpy as np
import jax
import jax.numpy as jnp
from jax.experimental import pallas as pl
from jax.experimental.pallas import tpu as pltpu

LANE = 128


# ----------------------------- schedule (host, numpy) ------------------------
def linear_beta_schedule(timesteps, min_beta=1e-4, max_beta=0.06):
    return np.linspace(min_beta, max_beta, timesteps)


def make_diffusion_buffers(k_step):
    betas = linear_beta_schedule(k_step)
    alphas = 1.0 - betas
    alphas_cumprod = np.cumprod(alphas, axis=0)
    return {
        "sqrt_alphas_cumprod": jnp.asarray(np.sqrt(alphas_cumprod), jnp.float32),
        "sqrt_one_minus_alphas_cumprod": jnp.asarray(
            np.sqrt(1.0 - alphas_cumprod), jnp.float32
        ),
    }


# ----------------------------- Pallas kernel ---------------------------------
def _diffusion_fwd_kernel(
    sa_ref, soma_ref,                        # scalar-prefetch coeffs (SMEM, (B,))
    y_ref, noise_ref, cond_ref, bias1_ref,   # per-(batch, T-tile) activations
    w_in_t_ref, w_c_t_ref, wo_ref, bo_ref,   # bf16 weights + f32 out bias
    out_ref,
):
    b = pl.program_id(0)
    sa = sa_ref[b]          # sqrt(acp[t]) / norm_scale  (norm fold)
    soma = soma_ref[b]      # sqrt(1 - acp[t])

    # q_sample: elementwise with per-batch scalars in f32 (v5e has no bf16 VPU).
    x_noisy = (sa * y_ref[0].astype(jnp.float32)
               + soma * noise_ref[0].astype(jnp.float32))          # (C, Tt) f32

    # Input + cond projections: two small lane-dense MXU dots, f32 accumulation,
    # summed in f32.  cond stays bf16 (no upcast/downcast round trip), no concat.
    h = jnp.dot(w_in_t_ref[...], x_noisy.astype(jnp.bfloat16),
                preferred_element_type=jnp.float32)                 # (H, Tt)
    h = h + jnp.dot(w_c_t_ref[...], cond_ref[0],
                    preferred_element_type=jnp.float32)             # (H, Tt)
    # bias1 = b_in + b_c + step-embedding, (H, 1) broadcast over lanes.
    h = jax.nn.relu(h + bias1_ref[0])

    # Output projection (1x1 conv), lane-dense (C, Tt) result; bf16 writeback.
    out = jnp.dot(wo_ref[...], h.astype(jnp.bfloat16),
                  preferred_element_type=jnp.float32) + bo_ref[...]
    out_ref[...] = out[None].astype(out_ref.dtype)


# ----------------------------- tiling helper ---------------------------------
def _choose_t_tile(T, B, requested):
    """Lane-dense tile (multiple of 128) with >= 2 total grid blocks when possible."""
    t128 = -(-T // LANE) * LANE                       # T padded to a lane multiple
    tt = min(max(requested, LANE), t128)
    tt = (tt // LANE) * LANE
    n_blocks = B * (-(-t128 // tt))
    if n_blocks < 2 and t128 >= 2 * LANE:
        # keep both v7x TensorCores busy (no effect on v5e/v6e correctness/perf)
        tt = max(LANE, ((t128 // 2) // LANE) * LANE)
    return tt


# ----------------------------- channels-first core ---------------------------
def diffusion_denoise_forward_cf(buffers, weights, cond_ct, y_ct, t, noise_ct,
                                 norm_scale=1.0, t_tile=2048):
    """Channels-first core: cond_ct (B,E,T), y_ct/noise_ct (B,C,T).

    Returns model_out_ct (B, C, T) in bf16.  Use this entry point directly when
    the surrounding model is channels-first -- no relayout passes at all.
    """
    B, C, T = y_ct.shape
    E = cond_ct.shape[1]
    H = weights["w_in"].shape[-1]

    tt = _choose_t_tile(T, B, t_tile)
    T_pad = -(-T // tt) * tt
    n_t = T_pad // tt

    # bf16 storage/MXU-operand dtype (halves HBM traffic).  Pad (zeros) AFTER
    # the cast so the pad bytes are bf16 too; padding only triggers for ragged T.
    y_b = y_ct.astype(jnp.bfloat16)
    noise_b = noise_ct.astype(jnp.bfloat16)
    cond_b = cond_ct.astype(jnp.bfloat16)
    if T_pad != T:
        pad = ((0, 0), (0, 0), (0, T_pad - T))
        y_b = jnp.pad(y_b, pad)
        noise_b = jnp.pad(noise_b, pad)
        cond_b = jnp.pad(cond_b, pad)

    # Schedule gathers; norm_scale folded into sa (no extra y/norm_scale HBM pass).
    sa_t = (buffers["sqrt_alphas_cumprod"][t] / norm_scale).astype(jnp.float32)    # (B,)
    soma_t = buffers["sqrt_one_minus_alphas_cumprod"][t].astype(jnp.float32)       # (B,)

    # Tiny diffusion-step embedding MLP (B x H) + combined bias for the projections.
    half = H // 2
    freqs = jnp.exp(-jnp.log(10000.0) * jnp.arange(half, dtype=jnp.float32) / (half - 1))
    args = t.astype(jnp.float32)[:, None] * freqs[None, :]
    emb = jnp.concatenate([jnp.sin(args), jnp.cos(args)], axis=-1)                 # (B, H)
    emb = jnp.tanh(emb @ weights["w_t"] + weights["b_t"])                          # (B, H)
    bias1 = (emb + weights["b_in"] + weights["b_c"]).astype(jnp.float32)[:, :, None]  # (B, H, 1)

    # Transposed 1x1-conv weights (bf16 operands, f32 accumulation on the MXU).
    w_in_t = weights["w_in"].T.astype(jnp.bfloat16)    # (H, C)
    w_c_t = weights["w_c"].T.astype(jnp.bfloat16)      # (H, E)
    w_out_t = weights["w_out"].T.astype(jnp.bfloat16)  # (C, H)
    b_out_col = weights["b_out"].reshape(C, 1).astype(jnp.float32)

    grid_spec = pltpu.PrefetchScalarGridSpec(
        num_scalar_prefetch=2,
        grid=(B, n_t),
        in_specs=[
            pl.BlockSpec((1, C, tt), lambda b, s, sa, soma: (b, 0, s)),   # y (bf16)
            pl.BlockSpec((1, C, tt), lambda b, s, sa, soma: (b, 0, s)),   # noise (bf16)
            pl.BlockSpec((1, E, tt), lambda b, s, sa, soma: (b, 0, s)),   # cond (bf16)
            pl.BlockSpec((1, H, 1), lambda b, s, sa, soma: (b, 0, 0)),    # combined bias
            pl.BlockSpec((H, C), lambda b, s, sa, soma: (0, 0)),          # w_in^T
            pl.BlockSpec((H, E), lambda b, s, sa, soma: (0, 0)),          # w_c^T
            pl.BlockSpec((C, H), lambda b, s, sa, soma: (0, 0)),          # w_out^T
            pl.BlockSpec((C, 1), lambda b, s, sa, soma: (0, 0)),          # b_out
        ],
        out_specs=pl.BlockSpec((1, C, tt), lambda b, s, sa, soma: (b, 0, s)),
    )

    flops = 2 * B * T_pad * H * (C + E + C)
    bytes_accessed = (
        2 * B * T_pad * (2 * C + E)        # bf16 y + noise + cond
        + 2 * B * C * T_pad                # bf16 output
        + 2 * (H * C + H * E + C * H)      # bf16 weights
        + 4 * (B * H + C + 2 * B)          # f32 biases + per-batch scalars
    )

    model_out_ct = pl.pallas_call(
        _diffusion_fwd_kernel,
        out_shape=jax.ShapeDtypeStruct((B, C, T_pad), jnp.bfloat16),
        grid_spec=grid_spec,
        compiler_params=pltpu.CompilerParams(
            dimension_semantics=("parallel", "parallel")),
        cost_estimate=pl.CostEstimate(
            flops=flops, transcendentals=0, bytes_accessed=bytes_accessed),
    )(
        sa_t, soma_t,
        y_b, noise_b, cond_b, bias1,
        w_in_t, w_c_t, w_out_t, b_out_col,
    )

    if T_pad != T:
        model_out_ct = model_out_ct[:, :, :T]
    return model_out_ct


# ----------------------------- module-signature wrapper ----------------------
def gaussian_diffusion_forward(buffers, weights, cond, y, t, noise,
                               norm_scale=1.0, t_tile=2048):
    """Module-compatible forward.  cond (B,T,E), y (B,T,C), t (B,), noise (B,T,C).

    Returns (target, model_out), both (B, T, C), like the PyTorch module.
    Layout plumbing here (one fused transpose+cast per tensor) mirrors the
    module's own .transpose(1, 2) calls; prefer diffusion_denoise_forward_cf
    when the surrounding pipeline is already channels-first.
    """
    cond_ct = jnp.swapaxes(cond, 1, 2)     # (B, E, T)
    y_ct = jnp.swapaxes(y, 1, 2)           # (B, C, T)
    noise_ct = jnp.swapaxes(noise, 1, 2)   # (B, C, T)

    model_out_ct = diffusion_denoise_forward_cf(
        buffers, weights, cond_ct, y_ct, t, noise_ct,
        norm_scale=norm_scale, t_tile=t_tile)

    model_out = jnp.swapaxes(model_out_ct, 1, 2)   # (B, T, C), bf16
    # objective == "pred_noise" -> target is the raw (f32) noise.
    return noise, model_out


# ----------------------------- pure-JAX reference ----------------------------
def _reference_forward(buffers, weights, cond, y, t, noise, norm_scale=1.0):
    x_start = y / norm_scale
    sa = buffers["sqrt_alphas_cumprod"][t][:, None, None]
    soma = buffers["sqrt_one_minus_alphas_cumprod"][t][:, None, None]
    x_noisy = sa * x_start + soma * noise

    H = weights["w_in"].shape[-1]
    half = H // 2
    freqs = jnp.exp(-jnp.log(10000.0) * jnp.arange(half, dtype=jnp.float32) / (half - 1))
    args = t.astype(jnp.float32)[:, None] * freqs[None, :]
    emb = jnp.concatenate([jnp.sin(args), jnp.cos(args)], axis=-1)
    emb = jnp.tanh(emb @ weights["w_t"] + weights["b_t"])[:, None, :]

    h = jnp.einsum("btc,ch->bth", x_noisy, weights["w_in"]) + weights["b_in"]
    c = jnp.einsum("bte,eh->bth", cond, weights["w_c"]) + weights["b_c"]
    h = jax.nn.relu(h + c + emb)
    out = jnp.einsum("bth,hc->btc", h, weights["w_out"]) + weights["b_out"]
    return noise, out


# ----------------------------- main ------------------------------------------
if __name__ == "__main__":
    C = 8                 # out_dim (mel / data channels) == denoise_fn.in_dim
    E = 32                # cond (encoder hidden) dim == in_dim
    H = 32                # denoiser hidden dim
    K_STEP = 100
    NORM_SCALE = 2.0

    key = jax.random.PRNGKey(0)
    (k_cond, k_y, k_noise, k_t,
     k_win, k_wc, k_wout, k_wt) = jax.random.split(key, 8)

    weights = {
        "w_in": 0.1 * jax.random.normal(k_win, (C, H), jnp.float32),
        "b_in": jnp.zeros((1, H), jnp.float32),
        "w_c": 0.1 * jax.random.normal(k_wc, (E, H), jnp.float32),
        "b_c": jnp.zeros((1, H), jnp.float32),
        "w_out": 0.1 * jax.random.normal(k_wout, (H, C), jnp.float32),
        "b_out": jnp.zeros((1, C), jnp.float32),
        "w_t": 0.1 * jax.random.normal(k_wt, (H, H), jnp.float32),
        "b_t": jnp.zeros((H,), jnp.float32),
    }
    buffers = make_diffusion_buffers(K_STEP)

    def run_case(B, T):
        kc, ky, kn, kt = jax.random.split(jax.random.fold_in(key, T), 4)
        cond = jax.random.normal(kc, (B, T, E), jnp.float32)
        y = jax.random.normal(ky, (B, T, C), jnp.float32)
        noise = jax.random.normal(kn, (B, T, C), jnp.float32)
        # TODO(synk): PyTorch draws t / noise internally via torch.randint / randn;
        # here they are drawn in JAX glue and fed in for determinism.
        t = jax.random.randint(kt, (B,), 0, K_STEP, jnp.int32)

        target, model_out = gaussian_diffusion_forward(
            buffers, weights, cond, y, t, noise, norm_scale=NORM_SCALE)
        jax.block_until_ready((target, model_out))

        ref_target, ref_out = _reference_forward(
            buffers, weights, cond, y, t, noise, norm_scale=NORM_SCALE)
        assert target.shape == (B, T, C) and model_out.shape == (B, T, C)
        np.testing.assert_allclose(np.asarray(target), np.asarray(ref_target),
                                   rtol=1e-6, atol=1e-6)
        # Kernel uses bf16 activation/weight streams (f32 accumulation) and a
        # bf16 output; the reference is full f32 -> bf16-level tolerance.
        np.testing.assert_allclose(np.asarray(model_out, dtype=np.float32),
                                   np.asarray(ref_out),
                                   rtol=5e-2, atol=5e-2)

    run_case(B=2, T=512)    # lane-aligned path (no padding)
    run_case(B=2, T=200)    # ragged T -> pad-to-128 path, still unmasked stores

    print("KERNEL_OK")
</pallas_src>

<mosaic_0001>
module attributes {stable_mosaic.version = 11 : i64} {
  func.func @_diffusion_fwd_kernel(%arg0: i32, %arg1: i32, %arg2: memref<2xf32, #tpu.memory_space<smem>>, %arg3: memref<2xf32, #tpu.memory_space<smem>>, %arg4: memref<1x8x512xbf16, #tpu.memory_space<vmem>>, %arg5: memref<1x8x512xbf16, #tpu.memory_space<vmem>>, %arg6: memref<1x32x512xbf16, #tpu.memory_space<vmem>>, %arg7: memref<1x32x1xf32, #tpu.memory_space<vmem>>, %arg8: memref<32x8xbf16, #tpu.memory_space<vmem>>, %arg9: memref<32x32xbf16, #tpu.memory_space<vmem>>, %arg10: memref<8x32xbf16, #tpu.memory_space<vmem>>, %arg11: memref<8x1xf32, #tpu.memory_space<vmem>>, %arg12: memref<1x8x512xbf16, #tpu.memory_space<vmem>>) attributes {dimension_semantics = [#tpu.dimension_semantics<parallel>, #tpu.dimension_semantics<parallel>], iteration_bounds = array<i64: 2, 1>, scalar_prefetch = 2 : i64, scratch_operands = 0 : i64, tpu.core_type = #tpu.core_type<tc>, window_params = [{transform_indices = @transform_0, window_bounds = array<i64: 1, 8, 512>}, {transform_indices = @transform_1, window_bounds = array<i64: 1, 8, 512>}, {transform_indices = @transform_2, window_bounds = array<i64: 1, 32, 512>}, {transform_indices = @transform_3, window_bounds = array<i64: 1, 32, 1>}, {pipeline_mode = #tpu.pipeline_mode<synchronous>, transform_indices = @transform_4, window_bounds = array<i64: 32, 8>}, {pipeline_mode = #tpu.pipeline_mode<synchronous>, transform_indices = @transform_5, window_bounds = array<i64: 32, 32>}, {pipeline_mode = #tpu.pipeline_mode<synchronous>, transform_indices = @transform_6, window_bounds = array<i64: 8, 32>}, {pipeline_mode = #tpu.pipeline_mode<synchronous>, transform_indices = @transform_7, window_bounds = array<i64: 8, 1>}, {transform_indices = @transform_8, window_bounds = array<i64: 1, 8, 512>}]} {
    %0 = arith.index_cast %arg0 : i32 to index
    %1 = memref.load %arg2[%0] : memref<2xf32, #tpu.memory_space<smem>>
    %2 = arith.index_cast %arg0 : i32 to index
    %3 = memref.load %arg3[%2] : memref<2xf32, #tpu.memory_space<smem>>
    %c0 = arith.constant 0 : index
    %c0_0 = arith.constant 0 : index
    %c0_1 = arith.constant 0 : index
    %4 = vector.load %arg4[%c0, %c0_0, %c0_1] : memref<1x8x512xbf16, #tpu.memory_space<vmem>>, vector<1x8x512xbf16>
    %5 = vector.shape_cast %4 : vector<1x8x512xbf16> to vector<8x512xbf16>
    %6 = arith.extf %5 : vector<8x512xbf16> to vector<8x512xf32>
    %7 = vector.broadcast %1 : f32 to vector<8x512xf32>
    %8 = arith.mulf %7, %6 : vector<8x512xf32>
    %c0_2 = arith.constant 0 : index
    %c0_3 = arith.constant 0 : index
    %c0_4 = arith.constant 0 : index
    %9 = vector.load %arg5[%c0_2, %c0_3, %c0_4] : memref<1x8x512xbf16, #tpu.memory_space<vmem>>, vector<1x8x512xbf16>
    %10 = vector.shape_cast %9 : vector<1x8x512xbf16> to vector<8x512xbf16>
    %11 = arith.extf %10 : vector<8x512xbf16> to vector<8x512xf32>
    %12 = vector.broadcast %3 : f32 to vector<8x512xf32>
    %13 = arith.mulf %12, %11 : vector<8x512xf32>
    %14 = arith.addf %8, %13 : vector<8x512xf32>
    %c0_5 = arith.constant 0 : index
    %c0_6 = arith.constant 0 : index
    %15 = vector.load %arg8[%c0_5, %c0_6] : memref<32x8xbf16, #tpu.memory_space<vmem>>, vector<32x8xbf16>
    %16 = arith.truncf %14 : vector<8x512xf32> to vector<8x512xbf16>
    %cst = arith.constant dense<0.000000e+00> : vector<32x512xf32>
    %17 = tpu.matmul %15, %16, %cst {dimension_numbers = #tpu.dot_dimension_numbers<[1], [0], [0], [1], [0, 0, 1, 1], [], []>} : vector<32x8xbf16>, vector<8x512xbf16>, vector<32x512xf32> -> vector<32x512xf32>
    %c0_7 = arith.constant 0 : index
    %c0_8 = arith.constant 0 : index
    %18 = vector.load %arg9[%c0_7, %c0_8] : memref<32x32xbf16, #tpu.memory_space<vmem>>, vector<32x32xbf16>
    %c0_9 = arith.constant 0 : index
    %c0_10 = arith.constant 0 : index
    %c0_11 = arith.constant 0 : index
    %19 = vector.load %arg6[%c0_9, %c0_10, %c0_11] : memref<1x32x512xbf16, #tpu.memory_space<vmem>>, vector<1x32x512xbf16>
    %20 = vector.shape_cast %19 : vector<1x32x512xbf16> to vector<32x512xbf16>
    %cst_12 = arith.constant dense<0.000000e+00> : vector<32x512xf32>
    %21 = tpu.matmul %18, %20, %cst_12 {dimension_numbers = #tpu.dot_dimension_numbers<[1], [0], [0], [1], [0, 0, 1, 1], [], []>} : vector<32x32xbf16>, vector<32x512xbf16>, vector<32x512xf32> -> vector<32x512xf32>
    %22 = arith.addf %17, %21 : vector<32x512xf32>
    %c0_13 = arith.constant 0 : index
    %c0_14 = arith.constant 0 : index
    %c0_15 = arith.constant 0 : index
    %23 = vector.load %arg7[%c0_13, %c0_14, %c0_15] : memref<1x32x1xf32, #tpu.memory_space<vmem>>, vector<1x32x1xf32>
    %24 = vector.shape_cast %23 : vector<1x32x1xf32> to vector<32x1xf32>
    %25 = vector.broadcast %24 : vector<32x1xf32> to vector<32x512xf32>
    %26 = arith.addf %22, %25 : vector<32x512xf32>
    %cst_16 = arith.constant 0.000000e+00 : f32
    %27 = vector.broadcast %cst_16 : f32 to vector<32x512xf32>
    %28 = arith.maximumf %26, %27 : vector<32x512xf32>
    %c0_17 = arith.constant 0 : index
    %c0_18 = arith.constant 0 : index
    %29 = vector.load %arg10[%c0_17, %c0_18] : memref<8x32xbf16, #tpu.memory_space<vmem>>, vector<8x32xbf16>
    %30 = arith.truncf %28 : vector<32x512xf32> to vector<32x512xbf16>
    %cst_19 = arith.constant dense<0.000000e+00> : vector<8x512xf32>
    %31 = tpu.matmul %29, %30, %cst_19 {dimension_numbers = #tpu.dot_dimension_numbers<[1], [0], [0], [1], [0, 0, 1, 1], [], []>} : vector<8x32xbf16>, vector<32x512xbf16>, vector<8x512xf32> -> vector<8x512xf32>
    %c0_20 = arith.constant 0 : index
    %c0_21 = arith.constant 0 : index
    %32 = vector.load %arg11[%c0_20, %c0_21] : memref<8x1xf32, #tpu.memory_space<vmem>>, vector<8x1xf32>
    %33 = vector.broadcast %32 : vector<8x1xf32> to vector<8x512xf32>
    %34 = arith.addf %31, %33 : vector<8x512xf32>
    %35 = vector.shape_cast %34 : vector<8x512xf32> to vector<1x8x512xf32>
    %36 = arith.truncf %35 : vector<1x8x512xf32> to vector<1x8x512xbf16>
    %c0_22 = arith.constant 0 : index
    %c0_23 = arith.constant 0 : index
    %c0_24 = arith.constant 0 : index
    %37 = vector.load %arg12[%c0_22, %c0_23, %c0_24] : memref<1x8x512xbf16, #tpu.memory_space<vmem>>, vector<1x8x512xbf16>
    tpu.vector_store %arg12[%c0_22, %c0_23, %c0_24], %36 {strides = array<i32>} : memref<1x8x512xbf16, #tpu.memory_space<vmem>>, vector<1x8x512xbf16>,
    return
  }
  func.func @transform_0(%arg0: i32, %arg1: i32, %arg2: memref<2xf32, #tpu.memory_space<smem>>, %arg3: memref<2xf32, #tpu.memory_space<smem>>) -> (i32, i32, i32) {
    %c0_i32 = arith.constant 0 : i32
    %c0_i32_0 = arith.constant 0 : i32
    return %arg0, %c0_i32, %arg1 : i32, i32, i32
  }
  func.func @transform_1(%arg0: i32, %arg1: i32, %arg2: memref<2xf32, #tpu.memory_space<smem>>, %arg3: memref<2xf32, #tpu.memory_space<smem>>) -> (i32, i32, i32) {
    %c0_i32 = arith.constant 0 : i32
    %c0_i32_0 = arith.constant 0 : i32
    return %arg0, %c0_i32, %arg1 : i32, i32, i32
  }
  func.func @transform_2(%arg0: i32, %arg1: i32, %arg2: memref<2xf32, #tpu.memory_space<smem>>, %arg3: memref<2xf32, #tpu.memory_space<smem>>) -> (i32, i32, i32) {
    %c0_i32 = arith.constant 0 : i32
    %c0_i32_0 = arith.constant 0 : i32
    return %arg0, %c0_i32, %arg1 : i32, i32, i32
  }
  func.func @transform_3(%arg0: i32, %arg1: i32, %arg2: memref<2xf32, #tpu.memory_space<smem>>, %arg3: memref<2xf32, #tpu.memory_space<smem>>) -> (i32, i32, i32) {
    %c0_i32 = arith.constant 0 : i32
    %c0_i32_0 = arith.constant 0 : i32
    %c0_i32_1 = arith.constant 0 : i32
    return %arg0, %c0_i32, %c0_i32_0 : i32, i32, i32
  }
  func.func @transform_4(%arg0: i32, %arg1: i32, %arg2: memref<2xf32, #tpu.memory_space<smem>>, %arg3: memref<2xf32, #tpu.memory_space<smem>>) -> (i32, i32) {
    %c0_i32 = arith.constant 0 : i32
    %c0_i32_0 = arith.constant 0 : i32
    %c0_i32_1 = arith.constant 0 : i32
    return %c0_i32, %c0_i32_0 : i32, i32
  }
  func.func @transform_5(%arg0: i32, %arg1: i32, %arg2: memref<2xf32, #tpu.memory_space<smem>>, %arg3: memref<2xf32, #tpu.memory_space<smem>>) -> (i32, i32) {
    %c0_i32 = arith.constant 0 : i32
    %c0_i32_0 = arith.constant 0 : i32
    %c0_i32_1 = arith.constant 0 : i32
    return %c0_i32, %c0_i32_0 : i32, i32
  }
  func.func @transform_6(%arg0: i32, %arg1: i32, %arg2: memref<2xf32, #tpu.memory_space<smem>>, %arg3: memref<2xf32, #tpu.memory_space<smem>>) -> (i32, i32) {
    %c0_i32 = arith.constant 0 : i32
    %c0_i32_0 = arith.constant 0 : i32
    %c0_i32_1 = arith.constant 0 : i32
    return %c0_i32, %c0_i32_0 : i32, i32
  }
  func.func @transform_7(%arg0: i32, %arg1: i32, %arg2: memref<2xf32, #tpu.memory_space<smem>>, %arg3: memref<2xf32, #tpu.memory_space<smem>>) -> (i32, i32) {
    %c0_i32 = arith.constant 0 : i32
    %c0_i32_0 = arith.constant 0 : i32
    %c0_i32_1 = arith.constant 0 : i32
    return %c0_i32, %c0_i32_0 : i32, i32
  }
  func.func @transform_8(%arg0: i32, %arg1: i32, %arg2: memref<2xf32, #tpu.memory_space<smem>>, %arg3: memref<2xf32, #tpu.memory_space<smem>>) -> (i32, i32, i32) {
    %c0_i32 = arith.constant 0 : i32
    %c0_i32_0 = arith.constant 0 : i32
    return %arg0, %c0_i32, %arg1 : i32, i32, i32
  }
}

</mosaic_0001>

<llo_original>
// kernel: tpu_custom_call.1
$region0: #{tpu_custom_call.1}
  #allocation0 [shape = 'u32[]', space=smem, size = 0x4, offset = 0x4, fixed_abs, tag = 'smem constant byte address 0x4 - core index']
  #allocation1 [shape = 'u32[144,128]{1,0:T(1,128)}', space=vmem, size = 0x12000, scoped, tag = 'internal scratch']
  #allocation2 [shape = 's32[1]{0}', space=sflag, size = 0x4, scoped, tag = 'scoped memory for tpu_custom_call.1']
  #allocation3 [shape = 'u8[512]{0}', space=smem, size = 0x200, scoped, tag = 'prefetched SMEM operand 0']
  #allocation4 [shape = 'u8[512]{0}', space=smem, size = 0x200, scoped, tag = 'prefetched SMEM operand 1']
  %s0 = inlined_call_operand.vmem [shape: f32[2], index: 0, kind: input, shape index: {}]
  %s1 = inlined_call_operand.vmem [shape: f32[2], index: 1, kind: input, shape index: {}]
  %s2 = inlined_call_operand.vmem [shape: bf16[2,8,512], index: 2, kind: input, shape index: {}]
  %s3 = inlined_call_operand.vmem [shape: bf16[2,8,512], index: 3, kind: input, shape index: {}]
  %s4 = inlined_call_operand.hbm [shape: bf16[2,32,512], index: 4, kind: input, shape index: {}]
  %s5 = inlined_call_operand.vmem [shape: f32[2,32,1], index: 5, kind: input, shape index: {}]
  %s6 = inlined_call_operand.vmem [shape: bf16[32,8], index: 6, kind: input, shape index: {}]
  %s7 = inlined_call_operand.vmem [shape: bf16[32,32], index: 7, kind: input, shape index: {}]
  %s8 = inlined_call_operand.vmem [shape: bf16[8,32], index: 8, kind: input, shape index: {}]
  %s9 = inlined_call_operand.vmem [shape: f32[8,1], index: 9, kind: input, shape index: {}]
  %s10 = inlined_call_operand.hbm [shape: bf16[2,8,512], index: 10, kind: output, shape index: {}]
  %s11 = sld [smem:[#allocation0]]
  $region69: #{tpu_custom_call.1} parent=0
    _
  %s13 = ssub.s32 1, %s11
  %s14 = scalar_select 0, %s13, %s11
  %s15 = sshll.u32 %s0, 4
  %s16 = int_to_ptr.vmem [resolvable:$true] %s15
  %18 = dma.vmem_to_smem %s16, 16, [#allocation3], [#allocation2]
  %s19 = sshll.u32 %s1, 4
  %s20 = int_to_ptr.vmem [resolvable:$true] %s19
  %22 = dma.vmem_to_smem %s20, 16, [#allocation4], [#allocation2]
  %23 = dma.done [#allocation2], 32
  %24 = sfence
  $region1: #{tpu_custom_call.1} parent=0
    #allocation5 [shape = 'u8[65536]{0}', space=vmem, size = 0x10000, scoped, tag = 'input window, operand 4']
    #allocation6 [shape = 's32[2]{0}', space=sflag, size = 0x8, scoped, tag = 'scoped memory for tpu_custom_call.1']
    #allocation7 [shape = 's32[2]{0}', space=sflag, size = 0x8, scoped, tag = 'scoped memory for tpu_custom_call.1']
    #allocation8 [shape = 'u8[16384]{0}', space=vmem, size = 0x4000, scoped, tag = 'output window, operand 0']
    %25 = vsyncpa [#allocation6], 0
    %s26 = scalar_lea.sflag [#allocation6], 1
    %27 = vsyncpa %s26, 0
    %28 = vsyncpa [#allocation7], 0
    %s29 = scalar_lea.sflag [#allocation7], 1
    %30 = vsyncpa %s29, 0
    loop: start=0, step=1, limit=4
    $region2: #{tpu_custom_call.1} parent=1 // loop_pre_header
      _
    $region3: #{tpu_custom_call.1} parent=1 // loop_header
      %s32 = sphi 0, %s36
      %p33 = scmp.ge.s32.totalorder %s32, 4
      %s39 = sphi 0, %s51
      %s40 = sphi 0, %s47
      %s41 = sphi 0, %s39
      %s42 = sphi 0, %s40
      %s43 = sphi 0, %s41
      %s44 = sphi 0, %s42
      %s56 = sphi 0, %s58
      %s59 = sphi 0, %s56
      %s60 = sphi 0, %s59
      %s76 = sphi 0, %s60
      %s84 = sphi 0, %s86
      %s87 = sphi 0, %s84
      %s88 = sphi 0, %s87
      %s104 = sphi 0, %s88
      %s112 = sphi 0, %s114
      %s115 = sphi 0, %s112
      %s116 = sphi 0, %s115
      %s132 = sphi 0, %s116
      %s138 = sphi 0, %s140
      %s141 = sphi 0, %s138
      %s142 = sphi 0, %s141
      %s158 = sphi 0, %s142
      %s162 = sphi 0, %s162
      %s164 = sphi 0, %s162
      %s165 = sphi 0, %s164
      %s179 = sphi 0, %s165
      %s183 = sphi 0, %s183
      %s185 = sphi 0, %s183
      %s186 = sphi 0, %s185
      %s200 = sphi 0, %s186
      %s204 = sphi 0, %s204
      %s206 = sphi 0, %s204
      %s207 = sphi 0, %s206
      %s221 = sphi 0, %s207
      %s225 = sphi 0, %s225
      %s227 = sphi 0, %s225
      %s228 = sphi 0, %s227
      %s242 = sphi 0, %s228
      %s250 = sphi 0, %s252
      %s253 = sphi 0, %s250
      %s254 = sphi 0, %s253
      %s270 = sphi 0, %s254
    $region4: #{tpu_custom_call.1} parent=1 // loop_header_branch
      %35 = sbr.rel (%p33) target = $region8
    $region5: #{tpu_custom_call.1} parent=1 // loop_body
      %s37 = ssub.s32 %s32, 1
      %s38 = ssub.s32 %s32, 2
      %s45 = sadd.s32 1, %s40
      %p46 = scmp.ge.s32.totalorder %s45, 1
      %s47 = scalar_select %p46, 0, %s45
      %s48 = sadd.s32 1, %s39
      %s49 = scalar_select %p46, %s48, %s39
      %p50 = scmp.ge.s32.totalorder %s49, 2
      %s51 = scalar_select %p50, 0, %s49
      %s52 = ssub.s32 %s39, %s51
      %s53 = ssub.s32 %s40, %s47
      %s54 = sor.u32 %s52, %s53
      %p55 = scmp.eq.s32.totalorder %s54, 0
      %s57 = sadd.s32 %s56, 1
      %s58 = scalar_select %p55, %s56, %s57
      %p61 = pneg %p55
      %p62 = scmp.eq.s32.totalorder %s32, 1
      %p63 = por %p61, %p62
      %p64 = scmp.ne.s32.totalorder %s56, %s59
      %p65 = scmp.eq.s32.totalorder %s32, 0
      %p66 = por %p64, %p65
      %p67 = scmp.ne.s32.totalorder %s56, %s59
      %p68 = scmp.eq.s32.totalorder %s37, 1
      %p69 = por %p67, %p68
      %p70 = scmp.ne.s32.totalorder %s59, %s60
      %p71 = scmp.eq.s32.totalorder %s37, 0
      %p72 = por %p70, %p71
      %p73 = scmp.ne.s32.totalorder %s59, %s60
      %p74 = scmp.eq.s32.totalorder %s38, 1
      %p75 = por %p73, %p74
      %p77 = scmp.ne.s32.totalorder %s60, %s76
      %p78 = scmp.eq.s32.totalorder %s38, 0
      %p79 = por %p77, %p78
      %s80 = ssub.s32 %s39, %s51
      %s81 = ssub.s32 %s40, %s47
      %s82 = sor.u32 %s80, %s81
      %p83 = scmp.eq.s32.totalorder %s82, 0
      %s85 = sadd.s32 %s84, 1
      %s86 = scalar_select %p83, %s84, %s85
      %p89 = pneg %p83
      %p90 = scmp.eq.s32.totalorder %s32, 1
      %p91 = por %p89, %p90
      %p92 = scmp.ne.s32.totalorder %s84, %s87
      %p93 = scmp.eq.s32.totalorder %s32, 0
      %p94 = por %p92, %p93
      %p95 = scmp.ne.s32.totalorder %s84, %s87
      %p96 = scmp.eq.s32.totalorder %s37, 1
      %p97 = por %p95, %p96
      %p98 = scmp.ne.s32.totalorder %s87, %s88
      %p99 = scmp.eq.s32.totalorder %s37, 0
      %p100 = por %p98, %p99
      %p101 = scmp.ne.s32.totalorder %s87, %s88
      %p102 = scmp.eq.s32.totalorder %s38, 1
      %p103 = por %p101, %p102
      %p105 = scmp.ne.s32.totalorder %s88, %s104
      %p106 = scmp.eq.s32.totalorder %s38, 0
      %p107 = por %p105, %p106
      %s108 = ssub.s32 %s39, %s51
      %s109 = ssub.s32 %s40, %s47
      %s110 = sor.u32 %s108, %s109
      %p111 = scmp.eq.s32.totalorder %s110, 0
      %s113 = sadd.s32 %s112, 1
      %s114 = scalar_select %p111, %s112, %s113
      %p117 = pneg %p111
      %p118 = scmp.eq.s32.totalorder %s32, 1
      %p119 = por %p117, %p118
      %p120 = scmp.ne.s32.totalorder %s112, %s115
      %p121 = scmp.eq.s32.totalorder %s32, 0
      %p122 = por %p120, %p121
      %p123 = scmp.ne.s32.totalorder %s112, %s115
      %p124 = scmp.eq.s32.totalorder %s37, 1
      %p125 = por %p123, %p124
      %p126 = scmp.ne.s32.totalorder %s115, %s116
      %p127 = scmp.eq.s32.totalorder %s37, 0
      %p128 = por %p126, %p127
      %p129 = scmp.ne.s32.totalorder %s115, %s116
      %p130 = scmp.eq.s32.totalorder %s38, 1
      %p131 = por %p129, %p130
      %p133 = scmp.ne.s32.totalorder %s116, %s132
      %p134 = scmp.eq.s32.totalorder %s38, 0
      %p135 = por %p133, %p134
      %s136 = ssub.s32 %s39, %s51
      %p137 = scmp.eq.s32.totalorder %s136, 0
      %s139 = sadd.s32 %s138, 1
      %s140 = scalar_select %p137, %s138, %s139
      %p143 = pneg %p137
      %p144 = scmp.eq.s32.totalorder %s32, 1
      %p145 = por %p143, %p144
      %p146 = scmp.ne.s32.totalorder %s138, %s141
      %p147 = scmp.eq.s32.totalorder %s32, 0
      %p148 = por %p146, %p147
      %p149 = scmp.ne.s32.totalorder %s138, %s141
      %p150 = scmp.eq.s32.totalorder %s37, 1
      %p151 = por %p149, %p150
      %p152 = scmp.ne.s32.totalorder %s141, %s142
      %p153 = scmp.eq.s32.totalorder %s37, 0
      %p154 = por %p152, %p153
      %p155 = scmp.ne.s32.totalorder %s141, %s142
      %p156 = scmp.eq.s32.totalorder %s38, 1
      %p157 = por %p155, %p156
      %p159 = scmp.ne.s32.totalorder %s142, %s158
      %p160 = scmp.eq.s32.totalorder %s38, 0
      %p161 = por %p159, %p160
      %s163 = sadd.s32 %s162, 1
      %p166 = scmp.eq.s32.totalorder %s32, 1
      %p167 = scmp.ne.s32.totalorder %s162, %s164
      %p168 = scmp.eq.s32.totalorder %s32, 0
      %p169 = por %p167, %p168
      %p170 = scmp.ne.s32.totalorder %s162, %s164
      %p171 = scmp.eq.s32.totalorder %s37, 1
      %p172 = por %p170, %p171
      %p173 = scmp.ne.s32.totalorder %s164, %s165
      %p174 = scmp.eq.s32.totalorder %s37, 0
      %p175 = por %p173, %p174
      %p176 = scmp.ne.s32.totalorder %s164, %s165
      %p177 = scmp.eq.s32.totalorder %s38, 1
      %p178 = por %p176, %p177
      %p180 = scmp.ne.s32.totalorder %s165, %s179
      %p181 = scmp.eq.s32.totalorder %s38, 0
      %p182 = por %p180, %p181
      %s184 = sadd.s32 %s183, 1
      %p187 = scmp.eq.s32.totalorder %s32, 1
      %p188 = scmp.ne.s32.totalorder %s183, %s185
      %p189 = scmp.eq.s32.totalorder %s32, 0
      %p190 = por %p188, %p189
      %p191 = scmp.ne.s32.totalorder %s183, %s185
      %p192 = scmp.eq.s32.totalorder %s37, 1
      %p193 = por %p191, %p192
      %p194 = scmp.ne.s32.totalorder %s185, %s186
      %p195 = scmp.eq.s32.totalorder %s37, 0
      %p196 = por %p194, %p195
      %p197 = scmp.ne.s32.totalorder %s185, %s186
      %p198 = scmp.eq.s32.totalorder %s38, 1
      %p199 = por %p197, %p198
      %p201 = scmp.ne.s32.totalorder %s186, %s200
      %p202 = scmp.eq.s32.totalorder %s38, 0
      %p203 = por %p201, %p202
      %s205 = sadd.s32 %s204, 1
      %p208 = scmp.eq.s32.totalorder %s32, 1
      %p209 = scmp.ne.s32.totalorder %s204, %s206
      %p210 = scmp.eq.s32.totalorder %s32, 0
      %p211 = por %p209, %p210
      %p212 = scmp.ne.s32.totalorder %s204, %s206
      %p213 = scmp.eq.s32.totalorder %s37, 1
      %p214 = por %p212, %p213
      %p215 = scmp.ne.s32.totalorder %s206, %s207
      %p216 = scmp.eq.s32.totalorder %s37, 0
      %p217 = por %p215, %p216
      %p218 = scmp.ne.s32.totalorder %s206, %s207
      %p219 = scmp.eq.s32.totalorder %s38, 1
      %p220 = por %p218, %p219
      %p222 = scmp.ne.s32.totalorder %s207, %s221
      %p223 = scmp.eq.s32.totalorder %s38, 0
      %p224 = por %p222, %p223
      %s226 = sadd.s32 %s225, 1
      %p229 = scmp.eq.s32.totalorder %s32, 1
      %p230 = scmp.ne.s32.totalorder %s225, %s227
      %p231 = scmp.eq.s32.totalorder %s32, 0
      %p232 = por %p230, %p231
      %p233 = scmp.ne.s32.totalorder %s225, %s227
      %p234 = scmp.eq.s32.totalorder %s37, 1
      %p235 = por %p233, %p234
      %p236 = scmp.ne.s32.totalorder %s227, %s228
      %p237 = scmp.eq.s32.totalorder %s37, 0
      %p238 = por %p236, %p237
      %p239 = scmp.ne.s32.totalorder %s227, %s228
      %p240 = scmp.eq.s32.totalorder %s38, 1
      %p241 = por %p239, %p240
      %p243 = scmp.ne.s32.totalorder %s228, %s242
      %p244 = scmp.eq.s32.totalorder %s38, 0
      %p245 = por %p243, %p244
      %s246 = ssub.s32 %s39, %s51
      %s247 = ssub.s32 %s40, %s47
      %s248 = sor.u32 %s246, %s247
      %p249 = scmp.eq.s32.totalorder %s248, 0
      %s251 = sadd.s32 %s250, 1
      %s252 = scalar_select %p249, %s250, %s251
      %p255 = pneg %p249
      %p256 = scmp.eq.s32.totalorder %s32, 1
      %p257 = por %p255, %p256
      %p258 = scmp.ne.s32.totalorder %s250, %s253
      %p259 = scmp.eq.s32.totalorder %s32, 0
      %p260 = por %p258, %p259
      %p261 = scmp.ne.s32.totalorder %s250, %s253
      %p262 = scmp.eq.s32.totalorder %s37, 1
      %p263 = por %p261, %p262
      %p264 = scmp.ne.s32.totalorder %s253, %s254
      %p265 = scmp.eq.s32.totalorder %s37, 0
      %p266 = por %p264, %p265
      %p267 = scmp.ne.s32.totalorder %s253, %s254
      %p268 = scmp.eq.s32.totalorder %s38, 1
      %p269 = por %p267, %p268
      %p271 = scmp.ne.s32.totalorder %s254, %s270
      %p272 = scmp.eq.s32.totalorder %s38, 0
      %p273 = por %p271, %p272
      %p274 = scmp.le.s32.totalorder 1, %s32
      %p275 = scmp.lt.s32.totalorder %s32, 3
      %p276 = pnand %p274, %p275
      %p277 = pneg %p276
      // Predicated region
      $region9: #{tpu_custom_call.1} parent=5 // pred_check
        _
      $region10: #{tpu_custom_call.1} parent=5 // pred_check_branch
        %279 = sbr.rel (%p276) target = $region12
      $region11: #{tpu_custom_call.1} parent=5 // pred_region
        %s280 = ssub.s32 %s32, 1
        // Predicated region
        $region13: #{tpu_custom_call.1} parent=11 // pred_check
          %p281 = pneg %p175
        $region14: #{tpu_custom_call.1} parent=11 // pred_check_branch
          %283 = sbr.rel (%p281) target = $region16
        $region15: #{tpu_custom_call.1} parent=11 // pred_region
          _
        $region16: #{tpu_custom_call.1} parent=11 // pred_fallthru
          _
        // Predicated region
        $region17: #{tpu_custom_call.1} parent=11 // pred_check
          %p284 = pneg %p196
        $region18: #{tpu_custom_call.1} parent=11 // pred_check_branch
          %286 = sbr.rel (%p284) target = $region20
        $region19: #{tpu_custom_call.1} parent=11 // pred_region
          _
        $region20: #{tpu_custom_call.1} parent=11 // pred_fallthru
          _
        // Predicated region
        $region21: #{tpu_custom_call.1} parent=11 // pred_check
          %p287 = pneg %p217
        $region22: #{tpu_custom_call.1} parent=11 // pred_check_branch
          %289 = sbr.rel (%p287) target = $region24
        $region23: #{tpu_custom_call.1} parent=11 // pred_region
          _
        $region24: #{tpu_custom_call.1} parent=11 // pred_fallthru
          _
        // Predicated region
        $region25: #{tpu_custom_call.1} parent=11 // pred_check
          %p290 = pneg %p238
        $region26: #{tpu_custom_call.1} parent=11 // pred_check_branch
          %292 = sbr.rel (%p290) target = $region28
        $region27: #{tpu_custom_call.1} parent=11 // pred_region
          _
        $region28: #{tpu_custom_call.1} parent=11 // pred_fallthru
          _
      $region12: #{tpu_custom_call.1} parent=5 // pred_fallthru
        _
      %p293 = scmp.lt.s32.totalorder %s32, 2
      // Predicated region
      $region29: #{tpu_custom_call.1} parent=5 // pred_check
        %p294 = pneg %p293
      $region30: #{tpu_custom_call.1} parent=5 // pred_check_branch
        %296 = sbr.rel (%p294) target = $region32
      $region31: #{tpu_custom_call.1} parent=5 // pred_region
        // Predicated region
        $region33: #{tpu_custom_call.1} parent=31 // pred_check
          %p297 = pneg %p66
        $region34: #{tpu_custom_call.1} parent=31 // pred_check_branch
          %299 = sbr.rel (%p297) target = $region36
        $region35: #{tpu_custom_call.1} parent=31 // pred_region
          %s300 = smul.u32 4, %s40
          %p301 = scmp.lt.s32.totalorder %s39, 1
          %s302 = scalar_select %p301, %s39, 1
          %p303 = scmp.lt.s32.totalorder %s300, 3
          %s304 = scalar_select %p303, %s300, 3
          %s305 = smul.addr %s302, 4
          %s306 = sadd.s32 %s304, %s305
          %s307 = smul.addr %s306, 4
          %s308 = scalar_lea.vmem %s2, %s307
          %s309 = smul.u32 4, %s40
        $region36: #{tpu_custom_call.1} parent=31 // pred_fallthru
          _
        // Predicated region
        $region37: #{tpu_custom_call.1} parent=31 // pred_check
          %p310 = pneg %p94
        $region38: #{tpu_custom_call.1} parent=31 // pred_check_branch
          %312 = sbr.rel (%p310) target = $region40
        $region39: #{tpu_custom_call.1} parent=31 // pred_region
          %s313 = smul.u32 4, %s40
          %p314 = scmp.lt.s32.totalorder %s39, 1
          %s315 = scalar_select %p314, %s39, 1
          %p316 = scmp.lt.s32.totalorder %s313, 3
          %s317 = scalar_select %p316, %s313, 3
          %s318 = smul.addr %s315, 4
          %s319 = sadd.s32 %s317, %s318
          %s320 = smul.addr %s319, 4
          %s321 = scalar_lea.vmem %s3, %s320
          %s322 = smul.u32 4, %s40
        $region40: #{tpu_custom_call.1} parent=31 // pred_fallthru
          _
        // Predicated region
        $region41: #{tpu_custom_call.1} parent=31 // pred_check
          %p323 = pneg %p122
        $region42: #{tpu_custom_call.1} parent=31 // pred_check_branch
          %325 = sbr.rel (%p323) target = $region44
        $region43: #{tpu_custom_call.1} parent=31 // pred_region
          %s326 = sand.u32 %s112, 1
          %s327 = scalar_lea.sflag [#allocation6], %s326
          %s328 = sand.u32 %s112, 1
          %s329 = smul.addr %s328, 64
          %s330 = scalar_lea.vmem [#allocation5], %s329
          %s331 = smul.u32 4, %s40
          %s333 = ssub.s32 1024, 1024
          %334 = vsyncadd %s327, %s333
          %s335 = smul.addr %s39, 16
          %s336 = sadd.s32 %s331, %s335
          %s337 = smul.addr %s336, 64
          %s338 = scalar_lea.hbm %s4, %s337
          %s339 = sshll.u32 %s330, 4
          %s340 = int_to_ptr.vmem [resolvable:$true] %s339
          %345 = dma.hbm_to_vmem [thread:$0]  %s338, 1024, %s340, %s327, 256, 256, 16
        $region44: #{tpu_custom_call.1} parent=31 // pred_fallthru
          _
        // Predicated region
        $region45: #{tpu_custom_call.1} parent=31 // pred_check
          %p346 = pneg %p148
        $region46: #{tpu_custom_call.1} parent=31 // pred_check_branch
          %348 = sbr.rel (%p346) target = $region48
        $region47: #{tpu_custom_call.1} parent=31 // pred_region
          %p349 = scmp.lt.s32.totalorder %s39, 1
          %s350 = scalar_select %p349, %s39, 1
          %s351 = smul.addr %s350, 4
          %s352 = smul.addr %s351, 8
          %s353 = scalar_lea.vmem %s5, %s352
        $region48: #{tpu_custom_call.1} parent=31 // pred_fallthru
          _
      $region32: #{tpu_custom_call.1} parent=5 // pred_fallthru
        _
      %p354 = scmp.le.s32.totalorder 1, %s32
      %p355 = scmp.lt.s32.totalorder %s32, 3
      %p356 = pnand %p354, %p355
      %p357 = pneg %p356
      // Predicated region
      $region49: #{tpu_custom_call.1} parent=5 // pred_check
        _
      $region50: #{tpu_custom_call.1} parent=5 // pred_check_branch
        %359 = sbr.rel (%p356) target = $region52
      $region51: #{tpu_custom_call.1} parent=5 // pred_region
        %s360 = ssub.s32 %s32, 1
        %s361 = sand.u32 %s115, 1
        %s362 = scalar_lea.sflag [#allocation6], %s361
        %s363 = sand.u32 %s115, 1
        %s364 = smul.addr %s363, 64
        %s365 = scalar_lea.vmem [#allocation5], %s364
        // Predicated region
        $region53: #{tpu_custom_call.1} parent=51 // pred_check
          %p366 = pneg %p128
        $region54: #{tpu_custom_call.1} parent=51 // pred_check_branch
          %368 = sbr.rel (%p366) target = $region56
        $region55: #{tpu_custom_call.1} parent=51 // pred_region
          %369 = dma.done %s362, 1024
        $region56: #{tpu_custom_call.1} parent=51 // pred_fallthru
          _
        %s370 = smul.u32 4, %s42
        %p371 = scmp.lt.s32.totalorder %s41, 1
        %s372 = scalar_select %p371, %s41, 1
        %p373 = scmp.lt.s32.totalorder %s370, 3
        %s374 = scalar_select %p373, %s370, 3
        %s375 = smul.addr %s372, 4
        %s376 = sadd.s32 %s374, %s375
        %s377 = smul.addr %s376, 4
        %s378 = scalar_lea.vmem %s2, %s377
        %p379 = pneg %p72
        %p380 = pneg %p69
        %s381 = smul.u32 4, %s42
        %p382 = scmp.lt.s32.totalorder %s41, 1
        %s383 = scalar_select %p382, %s41, 1
        %p384 = scmp.lt.s32.totalorder %s381, 3
        %s385 = scalar_select %p384, %s381, 3
        %s386 = smul.addr %s383, 4
        %s387 = sadd.s32 %s385, %s386
        %s388 = smul.addr %s387, 4
        %s389 = scalar_lea.vmem %s3, %s388
        %p390 = pneg %p100
        %p391 = pneg %p97
        %s392 = sand.u32 %s115, 1
        %s393 = scalar_lea.sflag [#allocation6], %s392
        %s394 = sand.u32 %s115, 1
        %s395 = smul.addr %s394, 64
        %s396 = scalar_lea.vmem [#allocation5], %s395
        %p397 = pneg %p128
        %p398 = pneg %p125
        %p399 = scmp.lt.s32.totalorder %s41, 1
        %s400 = scalar_select %p399, %s41, 1
        %s401 = smul.addr %s400, 4
        %s402 = smul.addr %s401, 8
        %s403 = scalar_lea.vmem %s5, %s402
        %p404 = pneg %p154
        %p405 = pneg %p151
        %p406 = pneg %p175
        %p407 = pneg %p172
        %p408 = pneg %p196
        %p409 = pneg %p193
        %p410 = pneg %p217
        %p411 = pneg %p214
        %p412 = pneg %p238
        %p413 = pneg %p235
        %p414 = pneg %p266
        %p415 = pneg %p263
        %s416 = sand.u32 %s253, 1
        %s417 = scalar_lea.sflag [#allocation7], %s416
        %s418 = sand.u32 %s253, 1
        %s419 = smul.addr %s418, 16
        %s420 = scalar_lea.vmem [#allocation8], %s419
        %s421 = smul.u32 4, %s42
        %p422 = scmp.lt.s32.totalorder %s41, 1
        %s423 = scalar_select %p422, %s41, 1
        %p424 = scmp.lt.s32.totalorder %s421, 3
        %s425 = scalar_select %p424, %s421, 3
        %s426 = smul.addr %s423, 4
        %s427 = sadd.s32 %s425, %s426
        %s428 = smul.addr %s427, 4
        %s429 = scalar_lea.vmem %s2, %s428
        %s430 = smul.u32 4, %s42
        %s431 = smul.u32 4, %s42
        %p432 = scmp.lt.s32.totalorder %s41, 1
        %s433 = scalar_select %p432, %s41, 1
        %p434 = scmp.lt.s32.totalorder %s431, 3
        %s435 = scalar_select %p434, %s431, 3
        %s436 = smul.addr %s433, 4
        %s437 = sadd.s32 %s435, %s436
        %s438 = smul.addr %s437, 4
        %s439 = scalar_lea.vmem %s3, %s438
        %s440 = smul.u32 4, %s42
        %s441 = smul.u32 4, %s42
        %p442 = scmp.lt.s32.totalorder %s41, 1
        %s443 = scalar_select %p442, %s41, 1
        %s444 = smul.addr %s443, 4
        %s445 = smul.addr %s444, 8
        %s446 = scalar_lea.vmem %s5, %s445
        %s447 = smul.u32 4, %s42
        %s449 = sld [smem:[#allocation3 + %s41]]
        %s450 = sld [smem:[#allocation4 + %s41]]
        %v451 = vld [vmem:[%s429] sm:$0xff]
        %v452 = vld [vmem:[%s429 + $0x8] sm:$0xff]
        %v453 = vunpack.c.l.bf16 %v451
        %v454 = vunpack.c.h.bf16 %v451
        %v455 = vunpack.c.l.bf16 %v452
        %v456 = vunpack.c.h.bf16 %v452
        %v457 = vstv %s449
        %v458 = vmul.f32 %v457, %v453
        %v459 = vmul.f32 %v457, %v454
        %v460 = vmul.f32 %v457, %v455
        %v461 = vmul.f32 %v457, %v456
        %v462 = vld [vmem:[%s439] sm:$0xff]
        %v463 = vld [vmem:[%s439 + $0x8] sm:$0xff]
        %v464 = vunpack.c.l.bf16 %v462
        %v465 = vunpack.c.h.bf16 %v462
        %v466 = vunpack.c.l.bf16 %v463
        %v467 = vunpack.c.h.bf16 %v463
        %v468 = vstv %s450
        %v469 = vmul.f32 %v468, %v464
        %v470 = vmul.f32 %v468, %v465
        %v471 = vmul.f32 %v468, %v466
        %v472 = vmul.f32 %v468, %v467
        %v473 = vadd.f32 %v458, %v469
        %v474 = vadd.f32 %v459, %v470
        %v475 = vadd.f32 %v460, %v471
        %v476 = vadd.f32 %v461, %v472
        %v477 = vld [vmem:[%s6] sm:$0xf]
        %v478 = vld [vmem:[%s6 + $0x4] sm:$0xf]
        %v479 = vld [vmem:[%s6 + $0x8] sm:$0xf]
        %v480 = vld [vmem:[%s6 + $0xc] sm:$0xf]
        %v481 = vpack.c.bf16 %v473, %v473
        %v482 = vpack.c.bf16 %v474, %v474
        %v483 = vpack.c.bf16 %v475, %v475
        %v484 = vpack.c.bf16 %v476, %v476
        %v485 = vld [vmem:[%s7] sm:$0xf]
        %v486 = vld [vmem:[%s7 + $0x4] sm:$0xf]
        %v487 = vld [vmem:[%s7 + $0x8] sm:$0xf]
        %v488 = vld [vmem:[%s7 + $0xc] sm:$0xf]
        %v489 = vld [vmem:[%s365] sm:$0xff]
        %v490 = vld [vmem:[%s365 + $0x8] sm:$0xff]
        %v491 = vld [vmem:[%s365 + $0x10] sm:$0xff]
        %v492 = vld [vmem:[%s365 + $0x18] sm:$0xff]
        %v493 = vld [vmem:[%s365 + $0x20] sm:$0xff]
        %v494 = vld [vmem:[%s365 + $0x28] sm:$0xff]
        %v495 = vld [vmem:[%s365 + $0x30] sm:$0xff]
        %v496 = vld [vmem:[%s365 + $0x38] sm:$0xff]
        %v501 = vunpack.c.l.b16 %v485
        %v502 = vunpack.c.l.b16 %v486
        %v503 = vunpack.c.l.b16 %v487
        %v504 = vunpack.c.l.b16 %v488
        %v505 = vpack.c.b16 %v502, %v501
        %v506 = vpack.c.b16 %v504, %v503
        %v515 = vunpack.c.l.b16 %v489
        %v516 = vunpack.c.h.b16 %v489
        %v517 = vunpack.c.l.b16 %v490
        %v518 = vunpack.c.h.b16 %v490
        %v519 = vunpack.c.l.b16 %v491
        %v520 = vunpack.c.h.b16 %v491
        %v521 = vunpack.c.l.b16 %v492
        %v522 = vunpack.c.h.b16 %v492
        %v523 = vunpack.c.l.b16 %v493
        %v524 = vunpack.c.h.b16 %v493
        %v525 = vunpack.c.l.b16 %v494
        %v526 = vunpack.c.h.b16 %v494
        %v527 = vunpack.c.l.b16 %v495
        %v528 = vunpack.c.h.b16 %v495
        %v529 = vunpack.c.l.b16 %v496
        %v530 = vunpack.c.h.b16 %v496
        %v531 = vpack.c.b16 %v519, %v515
        %v532 = vpack.c.b16 %v520, %v516
        %v533 = vpack.c.b16 %v521, %v517
        %v534 = vpack.c.b16 %v522, %v518
        %v535 = vpack.c.b16 %v527, %v523
        %v536 = vpack.c.b16 %v528, %v524
        %v537 = vpack.c.b16 %v529, %v525
        %v538 = vpack.c.b16 %v530, %v526
        %vm547 = vcmask 261120
        %v549 = vsel %vm547, %v505, 0
        %v552 = vsel %vm547, %v506, 0
        %554 = vmatprep.subr.bf16.mxu0 0
        %555 = vmatpush1.bf16.msra.mxu0 0
        %556 = vmatprep.subr.bf16.mxu0 0
        %557 = vmatpush1.bf16.msra.mxu0 0
        %558 = vmatprep.subr.bf16.mxu0 0
        %559 = vmatpush1.bf16.msra.mxu0 0
        %560 = vmatprep.subr.bf16.mxu0 0
        %561 = vmatpush1.bf16.msra.mxu0 0
        %562 = vmatprep.subr.bf16.mxu0 0
        %563 = vmatpush1.bf16.msra.mxu0 0
        %564 = vmatprep.subr.bf16.mxu0 0
        %565 = vmatpush1.bf16.msra.mxu0 0
        %566 = vmatprep.subr.bf16.mxu0 %v536
        %567 = vmatpush1.bf16.msra.mxu0 %v535
        %568 = vmatprep.subr.bf16.mxu0 %v532
        %569 = vmatpush1.bf16.msra.mxu0 %v531
        %570 = vmatprep.subr.bf16.mxu0 0
        %571 = vmatpush2.bf16.msra.mxu0 0
        %572 = vmatprep.subr.bf16.mxu0 0
        %573 = vmatpush2.bf16.msra.mxu0 0
        %574 = vmatprep.subr.bf16.mxu0 0
        %575 = vmatpush2.bf16.msra.mxu0 0
        %576 = vmatprep.subr.bf16.mxu0 0
        %577 = vmatpush2.bf16.msra.mxu0 0
        %578 = vmatprep.subr.bf16.mxu0 0
        %579 = vmatpush2.bf16.msra.mxu0 0
        %580 = vmatprep.subr.bf16.mxu0 0
        %581 = vmatpush2.bf16.msra.mxu0 0
        %582 = vmatprep.subr.bf16.mxu0 0
        %583 = vmatpush2.bf16.msra.mxu0 0
        %584 = vmatprep.subr.bf16.mxu0 0
        %585 = vmatpush2.bf16.msra.mxu0 0
        %586 = vmatprep.mubr.bf16.mxu0 0
        %587 = vmatmul.mubr.bf16.gmra.mxu0 %v549
        %v588 = vpop.f32.mrf.mxu0
        %v589 = vadd.f32 0.0, %v588
        %v590 = vpop.f32.mrf.mxu0
        %v591 = vadd.f32 0.0, %v590
        %v592 = vpop.f32.mrf.mxu0
        %v593 = vadd.f32 0.0, %v592
        %v594 = vpop.f32.mrf.mxu0
        %v595 = vadd.f32 0.0, %v594
        %596 = vmatprep.mubr.bf16.mxu0 0
        %597 = vmatmul.mubr.bf16.gmra.mxu0 %v552
        %v598 = vpop.f32.mrf.mxu0
        %v599 = vadd.f32 0.0, %v598
        %v600 = vpop.f32.mrf.mxu0
        %v601 = vadd.f32 0.0, %v600
        %v602 = vpop.f32.mrf.mxu0
        %v603 = vadd.f32 0.0, %v602
        %v604 = vpop.f32.mrf.mxu0
        %v605 = vadd.f32 0.0, %v604
        %606 = vdwg.mxu0
        %607 = vmatprep.subr.bf16.mxu0 0
        %608 = vmatpush1.bf16.msra.mxu0 0
        %609 = vmatprep.subr.bf16.mxu0 0
        %610 = vmatpush1.bf16.msra.mxu0 0
        %611 = vmatprep.subr.bf16.mxu0 0
        %612 = vmatpush1.bf16.msra.mxu0 0
        %613 = vmatprep.subr.bf16.mxu0 0
        %614 = vmatpush1.bf16.msra.mxu0 0
        %615 = vmatprep.subr.bf16.mxu0 0
        %616 = vmatpush1.bf16.msra.mxu0 0
        %617 = vmatprep.subr.bf16.mxu0 0
        %618 = vmatpush1.bf16.msra.mxu0 0
        %619 = vmatprep.subr.bf16.mxu0 %v538
        %620 = vmatpush1.bf16.msra.mxu0 %v537
        %621 = vmatprep.subr.bf16.mxu0 %v534
        %622 = vmatpush1.bf16.msra.mxu0 %v533
        %623 = vmatprep.subr.bf16.mxu0 0
        %624 = vmatpush2.bf16.msra.mxu0 0
        %625 = vmatprep.subr.bf16.mxu0 0
        %626 = vmatpush2.bf16.msra.mxu0 0
        %627 = vmatprep.subr.bf16.mxu0 0
        %628 = vmatpush2.bf16.msra.mxu0 0
        %629 = vmatprep.subr.bf16.mxu0 0
        %630 = vmatpush2.bf16.msra.mxu0 0
        %631 = vmatprep.subr.bf16.mxu0 0
        %632 = vmatpush2.bf16.msra.mxu0 0
        %633 = vmatprep.subr.bf16.mxu0 0
        %634 = vmatpush2.bf16.msra.mxu0 0
        %635 = vmatprep.subr.bf16.mxu0 0
        %636 = vmatpush2.bf16.msra.mxu0 0
        %637 = vmatprep.subr.bf16.mxu0 0
        %638 = vmatpush2.bf16.msra.mxu0 0
        %639 = vmatprep.mubr.bf16.mxu0 0
        %640 = vmatmul.mubr.bf16.gmra.mxu0 %v549
        %v641 = vpop.f32.mrf.mxu0
        %v642 = vadd.f32 0.0, %v641
        %v643 = vpop.f32.mrf.mxu0
        %v644 = vadd.f32 0.0, %v643
        %v645 = vpop.f32.mrf.mxu0
        %v646 = vadd.f32 0.0, %v645
        %v647 = vpop.f32.mrf.mxu0
        %v648 = vadd.f32 0.0, %v647
        %649 = vmatprep.mubr.bf16.mxu0 0
        %650 = vmatmul.mubr.bf16.gmra.mxu0 %v552
        %v651 = vpop.f32.mrf.mxu0
        %v652 = vadd.f32 0.0, %v651
        %v653 = vpop.f32.mrf.mxu0
        %v654 = vadd.f32 0.0, %v653
        %v655 = vpop.f32.mrf.mxu0
        %v656 = vadd.f32 0.0, %v655
        %v657 = vpop.f32.mrf.mxu0
        %v658 = vadd.f32 0.0, %v657
        %659 = vdwg.mxu0
        %v664 = vunpack.c.l.b16 %v477
        %v665 = vunpack.c.l.b16 %v478
        %v666 = vunpack.c.l.b16 %v479
        %v667 = vunpack.c.l.b16 %v480
        %v668 = vpack.c.b16 %v665, %v664
        %v669 = vpack.c.b16 %v667, %v666
        %vm670 = vcmask 64512
        %v672 = vsel %vm670, %v668, 0
        %v675 = vsel %vm670, %v669, 0
        %vm677 = vcmask 1043456
        %v679 = vsel %vm677, %v481, 0
        %v682 = vsel %vm677, %v482, 0
        %v685 = vsel %vm677, %v483, 0
        %v688 = vsel %vm677, %v484, 0
        %690 = vmatprep.subr.bf16.mxu0 0
        %691 = vmatpush1.bf16.msra.mxu0 0
        %692 = vmatprep.subr.bf16.mxu0 0
        %693 = vmatpush1.bf16.msra.mxu0 0
        %694 = vmatprep.subr.bf16.mxu0 0
        %695 = vmatpush1.bf16.msra.mxu0 0
        %696 = vmatprep.subr.bf16.mxu0 0
        %697 = vmatpush1.bf16.msra.mxu0 0
        %698 = vmatprep.subr.bf16.mxu0 0
        %699 = vmatpush1.bf16.msra.mxu0 0
        %700 = vmatprep.subr.bf16.mxu0 0
        %701 = vmatpush1.bf16.msra.mxu0 0
        %702 = vmatprep.subr.bf16.mxu0 0
        %703 = vmatpush1.bf16.msra.mxu0 0
        %704 = vmatprep.subr.bf16.mxu0 %v682
        %705 = vmatpush1.bf16.msra.mxu0 %v679
        %706 = vmatprep.subr.bf16.mxu0 0
        %707 = vmatpush2.bf16.msra.mxu0 0
        %708 = vmatprep.subr.bf16.mxu0 0
        %709 = vmatpush2.bf16.msra.mxu0 0
        %710 = vmatprep.subr.bf16.mxu0 0
        %711 = vmatpush2.bf16.msra.mxu0 0
        %712 = vmatprep.subr.bf16.mxu0 0
        %713 = vmatpush2.bf16.msra.mxu0 0
        %714 = vmatprep.subr.bf16.mxu0 0
        %715 = vmatpush2.bf16.msra.mxu0 0
        %716 = vmatprep.subr.bf16.mxu0 0
        %717 = vmatpush2.bf16.msra.mxu0 0
        %718 = vmatprep.subr.bf16.mxu0 0
        %719 = vmatpush2.bf16.msra.mxu0 0
        %720 = vmatprep.subr.bf16.mxu0 0
        %721 = vmatpush2.bf16.msra.mxu0 0
        %722 = vmatprep.mubr.bf16.mxu0 0
        %723 = vmatmul.mubr.bf16.gmra.mxu0 %v672
        %v724 = vpop.f32.mrf.mxu0
        %v725 = vadd.f32 %v589, %v724
        %v726 = vpop.f32.mrf.mxu0
        %v727 = vadd.f32 %v591, %v726
        %v728 = vpop.f32.mrf.mxu0
        %v729 = vadd.f32 %v593, %v728
        %v730 = vpop.f32.mrf.mxu0
        %v731 = vadd.f32 %v595, %v730
        %732 = vmatprep.mubr.bf16.mxu0 0
        %733 = vmatmul.mubr.bf16.gmra.mxu0 %v675
        %v734 = vpop.f32.mrf.mxu0
        %v735 = vadd.f32 %v599, %v734
        %v736 = vpop.f32.mrf.mxu0
        %v737 = vadd.f32 %v601, %v736
        %v738 = vpop.f32.mrf.mxu0
        %v739 = vadd.f32 %v603, %v738
        %v740 = vpop.f32.mrf.mxu0
        %v741 = vadd.f32 %v605, %v740
        %742 = vdwg.mxu0
        %743 = vmatprep.subr.bf16.mxu0 0
        %744 = vmatpush1.bf16.msra.mxu0 0
        %745 = vmatprep.subr.bf16.mxu0 0
        %746 = vmatpush1.bf16.msra.mxu0 0
        %747 = vmatprep.subr.bf16.mxu0 0
        %748 = vmatpush1.bf16.msra.mxu0 0
        %749 = vmatprep.subr.bf16.mxu0 0
        %750 = vmatpush1.bf16.msra.mxu0 0
        %751 = vmatprep.subr.bf16.mxu0 0
        %752 = vmatpush1.bf16.msra.mxu0 0
        %753 = vmatprep.subr.bf16.mxu0 0
        %754 = vmatpush1.bf16.msra.mxu0 0
        %755 = vmatprep.subr.bf16.mxu0 0
        %756 = vmatpush1.bf16.msra.mxu0 0
        %757 = vmatprep.subr.bf16.mxu0 %v688
        %758 = vmatpush1.bf16.msra.mxu0 %v685
        %759 = vmatprep.subr.bf16.mxu0 0
        %760 = vmatpush2.bf16.msra.mxu0 0
        %761 = vmatprep.subr.bf16.mxu0 0
        %762 = vmatpush2.bf16.msra.mxu0 0
        %763 = vmatprep.subr.bf16.mxu0 0
        %764 = vmatpush2.bf16.msra.mxu0 0
        %765 = vmatprep.subr.bf16.mxu0 0
        %766 = vmatpush2.bf16.msra.mxu0 0
        %767 = vmatprep.subr.bf16.mxu0 0
        %768 = vmatpush2.bf16.msra.mxu0 0
        %769 = vmatprep.subr.bf16.mxu0 0
        %770 = vmatpush2.bf16.msra.mxu0 0
        %771 = vmatprep.subr.bf16.mxu0 0
        %772 = vmatpush2.bf16.msra.mxu0 0
        %773 = vmatprep.subr.bf16.mxu0 0
        %774 = vmatpush2.bf16.msra.mxu0 0
        %775 = vmatprep.mubr.bf16.mxu0 0
        %776 = vmatmul.mubr.bf16.gmra.mxu0 %v672
        %v777 = vpop.f32.mrf.mxu0
        %v778 = vadd.f32 %v642, %v777
        %v779 = vpop.f32.mrf.mxu0
        %v780 = vadd.f32 %v644, %v779
        %v781 = vpop.f32.mrf.mxu0
        %v782 = vadd.f32 %v646, %v781
        %v783 = vpop.f32.mrf.mxu0
        %v784 = vadd.f32 %v648, %v783
        %785 = vmatprep.mubr.bf16.mxu0 0
        %786 = vmatmul.mubr.bf16.gmra.mxu0 %v675
        %v787 = vpop.f32.mrf.mxu0
        %v788 = vadd.f32 %v652, %v787
        %v789 = vpop.f32.mrf.mxu0
        %v790 = vadd.f32 %v654, %v789
        %v791 = vpop.f32.mrf.mxu0
        %v792 = vadd.f32 %v656, %v791
        %v793 = vpop.f32.mrf.mxu0
        %v794 = vadd.f32 %v658, %v793
        %795 = vdwg.mxu0
        %v796 = vld [vmem:[%s446] sm:$0xff]
        %v797 = vld [vmem:[%s446 + $0x8] sm:$0xff]
        %v798 = vld [vmem:[%s446 + $0x10] sm:$0xff]
        %v799 = vld [vmem:[%s446 + $0x18] sm:$0xff]
        %801 = vset.pattern.permute.xlu0 0
        %802 = vperm.xlu0 %801, %v796
        %v803 = vpop.permute.xlu0 %802
        %806 = vset.pattern.permute.xlu0 0
        %807 = vperm.xlu0 %806, %v797
        %v808 = vpop.permute.xlu0 %807
        %811 = vset.pattern.permute.xlu0 0
        %812 = vperm.xlu0 %811, %v798
        %v813 = vpop.permute.xlu0 %812
        %816 = vset.pattern.permute.xlu0 0
        %817 = vperm.xlu0 %816, %v799
        %v818 = vpop.permute.xlu0 %817
        %v820 = vadd.f32 %v725, %v803
        %v821 = vadd.f32 %v727, %v803
        %v822 = vadd.f32 %v778, %v803
        %v823 = vadd.f32 %v780, %v803
        %v824 = vadd.f32 %v729, %v808
        %v825 = vadd.f32 %v731, %v808
        %v826 = vadd.f32 %v782, %v808
        %v827 = vadd.f32 %v784, %v808
        %v828 = vadd.f32 %v735, %v813
        %v829 = vadd.f32 %v737, %v813
        %v830 = vadd.f32 %v788, %v813
        %v831 = vadd.f32 %v790, %v813
        %v832 = vadd.f32 %v739, %v818
        %v833 = vadd.f32 %v741, %v818
        %v834 = vadd.f32 %v792, %v818
        %v835 = vadd.f32 %v794, %v818
        %v836 = vmax.f32 %v820, 0.0
        %v837 = vmax.f32 %v821, 0.0
        %v838 = vmax.f32 %v822, 0.0
        %v839 = vmax.f32 %v823, 0.0
        %v840 = vmax.f32 %v824, 0.0
        %v841 = vmax.f32 %v825, 0.0
        %v842 = vmax.f32 %v826, 0.0
        %v843 = vmax.f32 %v827, 0.0
        %v844 = vmax.f32 %v828, 0.0
        %v845 = vmax.f32 %v829, 0.0
        %v846 = vmax.f32 %v830, 0.0
        %v847 = vmax.f32 %v831, 0.0
        %v848 = vmax.f32 %v832, 0.0
        %v849 = vmax.f32 %v833, 0.0
        %v850 = vmax.f32 %v834, 0.0
        %v851 = vmax.f32 %v835, 0.0
        %v852 = vld [vmem:[%s8] sm:$0xf]
        %v853 = vpack.c.bf16 %v840, %v836
        %v854 = vpack.c.bf16 %v841, %v837
        %v855 = vpack.c.bf16 %v842, %v838
        %v856 = vpack.c.bf16 %v843, %v839
        %v857 = vpack.c.bf16 %v848, %v844
        %v858 = vpack.c.bf16 %v849, %v845
        %v859 = vpack.c.bf16 %v850, %v846
        %v860 = vpack.c.bf16 %v851, %v847
        %v861 = vld [vmem:[%s9] sm:$0xff]
        %863 = vset.pattern.permute.xlu0 0
        %864 = vperm.xlu0 %863, %v861
        %v865 = vpop.permute.xlu0 %864
        %v868 = vsel %vm547, %v852, 0
        %870 = vmatprep.subr.bf16.mxu0 0
        %871 = vmatpush1.bf16.msra.mxu0 0
        %872 = vmatprep.subr.bf16.mxu0 0
        %873 = vmatpush1.bf16.msra.mxu0 0
        %874 = vmatprep.subr.bf16.mxu0 0
        %875 = vmatpush1.bf16.msra.mxu0 0
        %876 = vmatprep.subr.bf16.mxu0 0
        %877 = vmatpush1.bf16.msra.mxu0 0
        %878 = vmatprep.subr.bf16.mxu0 0
        %879 = vmatpush1.bf16.msra.mxu0 0
        %880 = vmatprep.subr.bf16.mxu0 0
        %881 = vmatpush1.bf16.msra.mxu0 0
        %882 = vmatprep.subr.bf16.mxu0 %v858
        %883 = vmatpush1.bf16.msra.mxu0 %v857
        %884 = vmatprep.subr.bf16.mxu0 %v854
        %885 = vmatpush1.bf16.msra.mxu0 %v853
        %886 = vmatprep.subr.bf16.mxu0 0
        %887 = vmatpush2.bf16.msra.mxu0 0
        %888 = vmatprep.subr.bf16.mxu0 0
        %889 = vmatpush2.bf16.msra.mxu0 0
        %890 = vmatprep.subr.bf16.mxu0 0
        %891 = vmatpush2.bf16.msra.mxu0 0
        %892 = vmatprep.subr.bf16.mxu0 0
        %893 = vmatpush2.bf16.msra.mxu0 0
        %894 = vmatprep.subr.bf16.mxu0 0
        %895 = vmatpush2.bf16.msra.mxu0 0
        %896 = vmatprep.subr.bf16.mxu0 0
        %897 = vmatpush2.bf16.msra.mxu0 0
        %898 = vmatprep.subr.bf16.mxu0 0
        %899 = vmatpush2.bf16.msra.mxu0 0
        %900 = vmatprep.subr.bf16.mxu0 0
        %901 = vmatpush2.bf16.msra.mxu0 0
        %902 = vmatprep.mubr.bf16.mxu0 0
        %903 = vmatmul.mubr.bf16.gmra.mxu0 %v868
        %v904 = vpop.f32.mrf.mxu0
        %v905 = vadd.f32 %v865, %v904
        %v906 = vpop.f32.mrf.mxu0
        %v907 = vadd.f32 %v865, %v906
        %v908 = vpop.f32.mrf.mxu0
        %v909 = vpop.f32.mrf.mxu0
        %910 = vdwg.mxu0
        %911 = vmatprep.subr.bf16.mxu0 0
        %912 = vmatpush1.bf16.msra.mxu0 0
        %913 = vmatprep.subr.bf16.mxu0 0
        %914 = vmatpush1.bf16.msra.mxu0 0
        %915 = vmatprep.subr.bf16.mxu0 0
        %916 = vmatpush1.bf16.msra.mxu0 0
        %917 = vmatprep.subr.bf16.mxu0 0
        %918 = vmatpush1.bf16.msra.mxu0 0
        %919 = vmatprep.subr.bf16.mxu0 0
        %920 = vmatpush1.bf16.msra.mxu0 0
        %921 = vmatprep.subr.bf16.mxu0 0
        %922 = vmatpush1.bf16.msra.mxu0 0
        %923 = vmatprep.subr.bf16.mxu0 %v860
        %924 = vmatpush1.bf16.msra.mxu0 %v859
        %925 = vmatprep.subr.bf16.mxu0 %v856
        %926 = vmatpush1.bf16.msra.mxu0 %v855
        %927 = vmatprep.subr.bf16.mxu0 0
        %928 = vmatpush2.bf16.msra.mxu0 0
        %929 = vmatprep.subr.bf16.mxu0 0
        %930 = vmatpush2.bf16.msra.mxu0 0
        %931 = vmatprep.subr.bf16.mxu0 0
        %932 = vmatpush2.bf16.msra.mxu0 0
        %933 = vmatprep.subr.bf16.mxu0 0
        %934 = vmatpush2.bf16.msra.mxu0 0
        %935 = vmatprep.subr.bf16.mxu0 0
        %936 = vmatpush2.bf16.msra.mxu0 0
        %937 = vmatprep.subr.bf16.mxu0 0
        %938 = vmatpush2.bf16.msra.mxu0 0
        %939 = vmatprep.subr.bf16.mxu0 0
        %940 = vmatpush2.bf16.msra.mxu0 0
        %941 = vmatprep.subr.bf16.mxu0 0
        %942 = vmatpush2.bf16.msra.mxu0 0
        %943 = vmatprep.mubr.bf16.mxu0 0
        %944 = vmatmul.mubr.bf16.gmra.mxu0 %v868
        %v945 = vpop.f32.mrf.mxu0
        %v946 = vadd.f32 %v865, %v945
        %v947 = vpop.f32.mrf.mxu0
        %v948 = vadd.f32 %v865, %v947
        %v949 = vpop.f32.mrf.mxu0
        %v950 = vpop.f32.mrf.mxu0
        %951 = vdwg.mxu0
        %v952 = vpack.c.bf16 %v905, %v905
        %v953 = vpack.c.bf16 %v907, %v907
        %v954 = vpack.c.bf16 %v946, %v946
        %v955 = vpack.c.bf16 %v948, %v948
        %v960 = vunpack.c.l.b16 %v952
        %v961 = vunpack.c.l.b16 %v953
        %v962 = vunpack.c.l.b16 %v954
        %v963 = vunpack.c.l.b16 %v955
        %v964 = vpack.c.b16 %v961, %v960
        %v965 = vpack.c.b16 %v963, %v962
        %968 = vst [vmem:[%s420] sm:$0xff] %v964
        %969 = vst [vmem:[%s420 + $0x8] sm:$0xff] %v965
        %s970 = sand.u32 %s253, 1
        %s971 = scalar_lea.sflag [#allocation7], %s970
        %s972 = sand.u32 %s253, 1
        %s973 = smul.addr %s972, 16
        %s974 = scalar_lea.vmem [#allocation8], %s973
        // Predicated region
        $region57: #{tpu_custom_call.1} parent=51 // pred_check
          %p975 = pneg %p263
        $region58: #{tpu_custom_call.1} parent=51 // pred_check_branch
          %977 = sbr.rel (%p975) target = $region60
        $region59: #{tpu_custom_call.1} parent=51 // pred_region
          %s978 = smul.u32 4, %s42
          %s980 = ssub.s32 256, 256
          %981 = vsyncadd %s971, %s980
          %s982 = smul.addr %s41, 4
          %s983 = sadd.s32 %s978, %s982
          %s984 = smul.addr %s983, 64
          %s985 = scalar_lea.hbm %s10, %s984
          %s987 = sshll.u32 %s974, 4
          %s988 = int_to_ptr.vmem [resolvable:$true] %s987
          %990 = dma.vmem_to_hbm [thread:$0]  %s988, 256, %s985, %s971
        $region60: #{tpu_custom_call.1} parent=51 // pred_fallthru
          _
      $region52: #{tpu_custom_call.1} parent=5 // pred_fallthru
        _
      %p991 = scmp.le.s32.totalorder 2, %s32
      // Predicated region
      $region61: #{tpu_custom_call.1} parent=5 // pred_check
        %p992 = pneg %p991
      $region62: #{tpu_custom_call.1} parent=5 // pred_check_branch
        %994 = sbr.rel (%p992) target = $region64
      $region63: #{tpu_custom_call.1} parent=5 // pred_region
        %s995 = ssub.s32 %s32, 2
        // Predicated region
        $region65: #{tpu_custom_call.1} parent=63 // pred_check
          %p996 = pneg %p269
        $region66: #{tpu_custom_call.1} parent=63 // pred_check_branch
          %998 = sbr.rel (%p996) target = $region68
        $region67: #{tpu_custom_call.1} parent=63 // pred_region
          %s999 = sand.u32 %s254, 1
          %s1000 = scalar_lea.sflag [#allocation7], %s999
          %s1001 = sand.u32 %s254, 1
          %s1002 = smul.addr %s1001, 16
          %s1003 = scalar_lea.vmem [#allocation8], %s1002
          %1004 = dma.done %s1000, 256
        $region68: #{tpu_custom_call.1} parent=63 // pred_fallthru
          _
      $region64: #{tpu_custom_call.1} parent=5 // pred_fallthru
        _
    $region6: #{tpu_custom_call.1} parent=1 // loop_footer
      %s36 = sadd.s32 1, %s32
    $region7: #{tpu_custom_call.1} parent=1 // loop_footer_branch
      %31 = sbr.rel target = $region3
    $region8: #{tpu_custom_call.1} parent=1 // loop_exit
      _
    %1005 = vsyncpa [#allocation6], 1
    %s1006 = scalar_lea.sflag [#allocation6], 1
    %1007 = vsyncpa %s1006, 1
    %1008 = vsyncpa [#allocation7], 1
    %s1009 = scalar_lea.sflag [#allocation7], 1
    %1010 = vsyncpa %s1009, 1

</llo_original>
